<compile_context>
chip_gen: v7x
topology: tpu7x:2x2x1
jax: 0.10.0
libtpu: 0.0.40
codegen_flags: <defaults>
</compile_context>

<pallas_src>
import jax
import jax.numpy as jnp
from jax import lax
from jax.experimental import pallas as pl
from jax.experimental.pallas import tpu as pltpu


_SUBLANE = 8  # class axis padded 5 -> 8 (one sublane group)


def _ffnn_kernel(x_ref, wt_ref, b_ref, o_ref):
    # x:  [TB, D]  activations (batch on sublanes, features on lanes)
    # wt: [8, D]   fused weight, transposed: W_eff^T = W2 @ W1 (padded rows = 0)
    # b:  [8, 1]   fused bias; padded class rows hold -1e30 (mask baked in)
    # o:  [8, TB]  log-probs: classes on sublanes, batch on lanes (lane-dense)
    logits = lax.dot_general(
        wt_ref[...], x_ref[...],
        dimension_numbers=(((1,), (1,)), ((), ())),   # contract on D (q@k.T style)
        preferred_element_type=jnp.float32,
    ) + b_ref[...]                                    # [8, TB]

    # Numerically stable log-softmax over the sublane (class) axis.  Padded
    # rows carry -1e30 from the bias, so exp(z) underflows to 0 there and they
    # never perturb the max or the logsumexp.  No in-kernel masking needed.
    m = jnp.max(logits, axis=0, keepdims=True)        # [1, TB]
    z = logits - m
    lse = jnp.log(jnp.sum(jnp.exp(z), axis=0, keepdims=True))
    o_ref[...] = (z - lse).astype(o_ref.dtype)


def fuse_and_pad_params(w1, b1, w2, b2):
    """PyTorch-convention params -> fused, sublane-padded kernel params.

    w1: [H, D], b1: [H], w2: [O, H], b2: [O]  (nn.Linear weight layout).
    Returns (wt_pad [8, D], b_pad [8, 1], O).  Algebraic rewrite in f32 (not
    bit-identical to the two-GEMM reference, but well within 1e-5 at these
    sizes).  Do this ONCE per model, not per forward call.
    """
    w1 = jnp.asarray(w1, jnp.float32)
    b1 = jnp.asarray(b1, jnp.float32)
    w2 = jnp.asarray(w2, jnp.float32)
    b2 = jnp.asarray(b2, jnp.float32)
    D = w1.shape[1]
    O = w2.shape[0]
    assert O <= _SUBLANE, "class axis assumed to fit in one sublane group"

    # (x @ W1^T + b1) @ W2^T + b2  ==  x @ W_eff + b_eff,  W_eff^T = W2 @ W1.
    w_eff_t = w2 @ w1                 # [O, D]
    b_eff = b1 @ w2.T + b2            # [O]

    wt_pad = jnp.zeros((_SUBLANE, D), jnp.float32).at[:O, :].set(w_eff_t)
    # Large finite negative (not -inf) on padded class rows -> exp() == 0,
    # no inf-inf/NaN risk under reordering.
    b_pad = jnp.full((_SUBLANE, 1), -1e30, jnp.float32).at[:O, 0].set(b_eff)
    return wt_pad, b_pad, O


def ffnn_forward(x, wt_pad, b_pad, num_classes, *, tb=2048):
    """x: [B, D] -> log-probabilities [B, num_classes]."""
    x = jnp.asarray(x, jnp.float32)
    B, D = x.shape

    if B <= 256:
        # Single full block: block dims equal the array dims (legal even when
        # not (8,128)-aligned); no padding, no extra copy of x.
        TB = B
    else:
        # >= 2 grid steps (keeps both v7x TensorCores busy), capped at tb,
        # multiple of 128 so output stores stay lane-dense.  The ragged final
        # block (B % TB rows) is read padded / stored masked by Pallas -- no
        # wrapper-side padding copy of x.
        TB = min(tb, 128 * pl.cdiv(pl.cdiv(B, 2), 128))
    grid = (pl.cdiv(B, TB),)

    flops = 2 * B * D * _SUBLANE + 6 * B * _SUBLANE
    bytes_accessed = 4 * (B * D + _SUBLANE * (D + 1) + _SUBLANE * B)

    out_t = pl.pallas_call(
        _ffnn_kernel,
        out_shape=jax.ShapeDtypeStruct((_SUBLANE, B), jnp.float32),
        grid_spec=pltpu.PrefetchScalarGridSpec(
            num_scalar_prefetch=0,
            grid=grid,
            in_specs=[
                pl.BlockSpec((TB, D), lambda i: (i, 0)),        # activations
                pl.BlockSpec((_SUBLANE, D), lambda i: (0, 0)),  # fused W^T (VMEM-resident)
                pl.BlockSpec((_SUBLANE, 1), lambda i: (0, 0)),  # fused bias (+ mask)
            ],
            out_specs=pl.BlockSpec((_SUBLANE, TB), lambda i: (0, i)),
        ),
        compiler_params=pltpu.CompilerParams(
            dimension_semantics=("parallel",),
        ),
        cost_estimate=pl.CostEstimate(
            flops=flops,
            transcendentals=_SUBLANE * B,
            bytes_accessed=bytes_accessed,
        ),
    )(x, wt_pad, b_pad)

    # [8, B] -> [B, num_classes]; tiny (B x 8) slice+transpose outside the call.
    return out_t[:num_classes, :].T


def _init_linear(key, out_features, in_features):
    """Deterministic init mimicking nn.Linear's uniform(-1/sqrt(fan_in), ...)."""
    k_w, k_b = jax.random.split(key)
    bound = 1.0 / jnp.sqrt(jnp.float32(in_features))
    w = jax.random.uniform(k_w, (out_features, in_features), jnp.float32,
                           minval=-bound, maxval=bound)
    b = jax.random.uniform(k_b, (out_features,), jnp.float32,
                           minval=-bound, maxval=bound)
    return w, b


def _reference(x, w1, b1, w2, b2):
    # Exact (dead-ReLU) forward semantics of the PyTorch module.
    x1 = x @ w1.T + b1
    x3 = x1 @ w2.T + b2
    return jax.nn.log_softmax(x3, axis=-1)


if __name__ == "__main__":
    # Small shapes consistent with the module: batch=8, input_dim=32, h=32, out=5
    B, D, H, O = 8, 32, 32, 5

    key = jax.random.PRNGKey(0)
    k_x, k_w1, k_w2, k_xl = jax.random.split(key, 4)

    x = jax.random.normal(k_x, (B, D), jnp.float32)
    w1, b1 = _init_linear(k_w1, H, D)   # W1: Linear(input_dim, h)
    w2, b2 = _init_linear(k_w2, O, H)   # W2: Linear(h, 5)

    # One-time parameter fusion / padding (hoisted out of the per-call path).
    wt_pad, b_pad, n_cls = fuse_and_pad_params(w1, b1, w2, b2)

    # Small-batch path (single block, no padding).
    out = ffnn_forward(x, wt_pad, b_pad, n_cls)
    jax.block_until_ready(out)
    ref = _reference(x, w1, b1, w2, b2)
    assert out.shape == (B, O)
    assert jnp.allclose(out, ref, atol=1e-5, rtol=1e-5)

    # Tiled path with a non-multiple batch: exercises >=2 grid steps and the
    # ragged final block (Pallas boundary masking, no wrapper-side pad copy).
    B_big = 1040
    x_big = jax.random.normal(k_xl, (B_big, D), jnp.float32)
    out_big = ffnn_forward(x_big, wt_pad, b_pad, n_cls)
    jax.block_until_ready(out_big)
    ref_big = _reference(x_big, w1, b1, w2, b2)
    assert out_big.shape == (B_big, O)
    assert jnp.allclose(out_big, ref_big, atol=1e-5, rtol=1e-5)

    print("KERNEL_OK")
</pallas_src>

<mosaic_0001>
module attributes {stable_mosaic.version = 11 : i64} {
  func.func @_ffnn_kernel(%arg0: i32, %arg1: memref<8x32xf32, #tpu.memory_space<vmem>>, %arg2: memref<8x32xf32, #tpu.memory_space<vmem>>, %arg3: memref<8x1xf32, #tpu.memory_space<vmem>>, %arg4: memref<8x8xf32, #tpu.memory_space<vmem>>) attributes {dimension_semantics = [#tpu.dimension_semantics<parallel>], iteration_bounds = array<i64: 1>, scalar_prefetch = 0 : i64, scratch_operands = 0 : i64, tpu.core_type = #tpu.core_type<tc>, window_params = [{transform_indices = @transform_0, window_bounds = array<i64: 8, 32>}, {pipeline_mode = #tpu.pipeline_mode<synchronous>, transform_indices = @transform_1, window_bounds = array<i64: 8, 32>}, {pipeline_mode = #tpu.pipeline_mode<synchronous>, transform_indices = @transform_2, window_bounds = array<i64: 8, 1>}, {transform_indices = @transform_3, window_bounds = array<i64: 8, 8>}]} {
    %c0 = arith.constant 0 : index
    %c0_0 = arith.constant 0 : index
    %0 = vector.load %arg2[%c0, %c0_0] : memref<8x32xf32, #tpu.memory_space<vmem>>, vector<8x32xf32>
    %c0_1 = arith.constant 0 : index
    %c0_2 = arith.constant 0 : index
    %1 = vector.load %arg1[%c0_1, %c0_2] : memref<8x32xf32, #tpu.memory_space<vmem>>, vector<8x32xf32>
    %cst = arith.constant dense<0.000000e+00> : vector<8x8xf32>
    %2 = tpu.matmul %0, %1, %cst {dimension_numbers = #tpu.dot_dimension_numbers<[1], [1], [0], [0], [0, 0, 1, 0], [], []>} : vector<8x32xf32>, vector<8x32xf32>, vector<8x8xf32> -> vector<8x8xf32>
    %c0_3 = arith.constant 0 : index
    %c0_4 = arith.constant 0 : index
    %3 = vector.load %arg3[%c0_3, %c0_4] : memref<8x1xf32, #tpu.memory_space<vmem>>, vector<8x1xf32>
    %4 = vector.broadcast %3 : vector<8x1xf32> to vector<8x8xf32>
    %5 = arith.addf %2, %4 : vector<8x8xf32>
    %cst_5 = arith.constant dense<0xFF800000> : vector<8xf32>
    %6 = vector.multi_reduction <maximumf>, %5, %cst_5 [0] : vector<8x8xf32> to vector<8xf32>
    %7 = vector.shape_cast %6 : vector<8xf32> to vector<1x8xf32>
    %8 = vector.broadcast %7 : vector<1x8xf32> to vector<8x8xf32>
    %9 = arith.subf %5, %8 : vector<8x8xf32>
    %10 = math.exp %9 : vector<8x8xf32>
    %cst_6 = arith.constant dense<0.000000e+00> : vector<8xf32>
    %11 = vector.multi_reduction <add>, %10, %cst_6 [0] : vector<8x8xf32> to vector<8xf32>
    %12 = vector.shape_cast %11 : vector<8xf32> to vector<1x8xf32>
    %13 = math.log %12 : vector<1x8xf32>
    %14 = vector.broadcast %13 : vector<1x8xf32> to vector<8x8xf32>
    %15 = arith.subf %9, %14 : vector<8x8xf32>
    %c0_7 = arith.constant 0 : index
    %c0_8 = arith.constant 0 : index
    %16 = vector.load %arg4[%c0_7, %c0_8] : memref<8x8xf32, #tpu.memory_space<vmem>>, vector<8x8xf32>
    tpu.vector_store %arg4[%c0_7, %c0_8], %15 {strides = array<i32>} : memref<8x8xf32, #tpu.memory_space<vmem>>, vector<8x8xf32>,
    return
  }
  func.func @transform_0(%arg0: i32) -> (i32, i32) {
    %c0_i32 = arith.constant 0 : i32
    %c0_i32_0 = arith.constant 0 : i32
    return %arg0, %c0_i32 : i32, i32
  }
  func.func @transform_1(%arg0: i32) -> (i32, i32) {
    %c0_i32 = arith.constant 0 : i32
    %c0_i32_0 = arith.constant 0 : i32
    %c0_i32_1 = arith.constant 0 : i32
    return %c0_i32, %c0_i32_0 : i32, i32
  }
  func.func @transform_2(%arg0: i32) -> (i32, i32) {
    %c0_i32 = arith.constant 0 : i32
    %c0_i32_0 = arith.constant 0 : i32
    %c0_i32_1 = arith.constant 0 : i32
    return %c0_i32, %c0_i32_0 : i32, i32
  }
  func.func @transform_3(%arg0: i32) -> (i32, i32) {
    %c0_i32 = arith.constant 0 : i32
    %c0_i32_0 = arith.constant 0 : i32
    return %c0_i32, %arg0 : i32, i32
  }
}

</mosaic_0001>

<llo_original>
// kernel: tpu_custom_call.1
$region0: #{tpu_custom_call.1}
  #allocation0 [shape = 'u32[]', space=smem, size = 0x4, offset = 0x4, fixed_abs, tag = 'smem constant byte address 0x4 - core index']
  #allocation1 [shape = 'u32[144,128]{1,0:T(1,128)}', space=vmem, size = 0x12000, scoped, tag = 'internal scratch']
  %s0 = inlined_call_operand.vmem [shape: f32[8,32], index: 0, kind: input, shape index: {}]
  %s1 = inlined_call_operand.hbm [shape: f32[8,32], index: 1, kind: input, shape index: {}]
  %s2 = inlined_call_operand.vmem [shape: f32[8,1], index: 2, kind: input, shape index: {}]
  %s3 = inlined_call_operand.hbm [shape: f32[8,8], index: 3, kind: output, shape index: {}]
  %s4 = sld [smem:[#allocation0]]
  $region26: #{tpu_custom_call.1} parent=0
    _
  %s6 = ssub.s32 1, %s4
  %s7 = scalar_select 0, %s6, %s4
  $region1: #{tpu_custom_call.1} parent=0
    #allocation2 [shape = 'u8[4096]{0}', space=vmem, size = 0x1000, scoped, tag = 'input window, operand 1, single buffered']
    #allocation3 [shape = 's32[1]{0}', space=sflag, size = 0x4, scoped, tag = 'scoped memory for tpu_custom_call.1']
    #allocation4 [shape = 's32[1]{0}', space=sflag, size = 0x4, scoped, tag = 'scoped memory for tpu_custom_call.1']
    #allocation5 [shape = 'u8[4096]{0}', space=vmem, size = 0x1000, scoped, tag = 'output window, operand 0, single buffered']
    %8 = vsyncpa [#allocation3], 0
    %9 = vsyncpa [#allocation4], 0
    // Predicated region
    $region2: #{tpu_custom_call.1} parent=1 // pred_check
      _
    $region3: #{tpu_custom_call.1} parent=1 // pred_check_branch
      %11 = sbr.rel (0) target = $region5
    $region4: #{tpu_custom_call.1} parent=1 // pred_region
      _
    $region5: #{tpu_custom_call.1} parent=1 // pred_fallthru
      _
    // Predicated region
    $region6: #{tpu_custom_call.1} parent=1 // pred_check
      _
    $region7: #{tpu_custom_call.1} parent=1 // pred_check_branch
      %13 = sbr.rel (0) target = $region9
    $region8: #{tpu_custom_call.1} parent=1 // pred_region
      %s15 = ssub.s32 128, 128
      %16 = vsyncadd [#allocation3], %s15
      %s18 = sshll.u32 [#allocation2], 4
      %s19 = int_to_ptr.vmem [resolvable:$true] %s18
      %21 = dma.hbm_to_vmem [thread:$0]  %s1, 128, %s19, [#allocation3]
    $region9: #{tpu_custom_call.1} parent=1 // pred_fallthru
      _
    // Predicated region
    $region10: #{tpu_custom_call.1} parent=1 // pred_check
      _
    $region11: #{tpu_custom_call.1} parent=1 // pred_check_branch
      %23 = sbr.rel (0) target = $region13
    $region12: #{tpu_custom_call.1} parent=1 // pred_region
      _
    $region13: #{tpu_custom_call.1} parent=1 // pred_fallthru
      _
    // Predicated region
    $region14: #{tpu_custom_call.1} parent=1 // pred_check
      _
    $region15: #{tpu_custom_call.1} parent=1 // pred_check_branch
      %25 = sbr.rel (0) target = $region17
    $region16: #{tpu_custom_call.1} parent=1 // pred_region
      %26 = dma.done [#allocation3], 128
    $region17: #{tpu_custom_call.1} parent=1 // pred_fallthru
      _
    %v27 = vld [vmem:[#allocation2] sm:$0xff]
    %v28 = vld [vmem:[%s0] sm:$0xff]
    %v29 = vld [vmem:[%s2] sm:$0xff]
    %31 = vset.pattern.permute.xlu0 0
    %32 = vperm.xlu0 %31, %v29
    %v33 = vpop.permute.xlu0 %32
    %vm35 = vcmask 261120
    %v37 = vsel %vm35, %v27, 0
    %v40 = vsel %vm35, %v28, 0
    %42 = vmatprep.subr.mxu0 0.0
    %43 = vmatpush1.xpose.msra.mxu0 %v40
    %44 = vmatprep.subr.mxu0 0.0
    %45 = vmatpush1.xpose.msra.mxu0 0.0
    %46 = vmatprep.subr.mxu0 0.0
    %47 = vmatpush1.xpose.msra.mxu0 0.0
    %48 = vmatprep.subr.mxu0 0.0
    %49 = vmatpush1.xpose.msra.mxu0 0.0
    %50 = vmatprep.subr.mxu0 0.0
    %51 = vmatpush1.xpose.msra.mxu0 0.0
    %52 = vmatprep.subr.mxu0 0.0
    %53 = vmatpush1.xpose.msra.mxu0 0.0
    %54 = vmatprep.subr.mxu0 0.0
    %55 = vmatpush1.xpose.msra.mxu0 0.0
    %56 = vmatprep.subr.mxu0 0.0
    %57 = vmatpush1.xpose.msra.mxu0 0.0
    %58 = vmatprep.subr.mxu0 0.0
    %59 = vmatpush1.xpose.msra.mxu0 0.0
    %60 = vmatprep.subr.mxu0 0.0
    %61 = vmatpush1.xpose.msra.mxu0 0.0
    %62 = vmatprep.subr.mxu0 0.0
    %63 = vmatpush1.xpose.msra.mxu0 0.0
    %64 = vmatprep.subr.mxu0 0.0
    %65 = vmatpush1.xpose.msra.mxu0 0.0
    %66 = vmatprep.subr.mxu0 0.0
    %67 = vmatpush1.xpose.msra.mxu0 0.0
    %68 = vmatprep.subr.mxu0 0.0
    %69 = vmatpush1.xpose.msra.mxu0 0.0
    %70 = vmatprep.subr.mxu0 0.0
    %71 = vmatpush1.xpose.msra.mxu0 0.0
    %72 = vmatprep.subr.mxu0 0.0
    %73 = vmatpush1.xpose.msra.mxu0 0.0
    %74 = vmatprep.subr.mxu0 0.0
    %75 = vmatpush1.xpose.msra.mxu0 0.0
    %76 = vmatprep.subr.mxu0 0.0
    %77 = vmatpush1.xpose.msra.mxu0 0.0
    %78 = vmatprep.subr.mxu0 0.0
    %79 = vmatpush1.xpose.msra.mxu0 0.0
    %80 = vmatprep.subr.mxu0 0.0
    %81 = vmatpush1.xpose.msra.mxu0 0.0
    %82 = vmatprep.subr.mxu0 0.0
    %83 = vmatpush1.xpose.msra.mxu0 0.0
    %84 = vmatprep.subr.mxu0 0.0
    %85 = vmatpush1.xpose.msra.mxu0 0.0
    %86 = vmatprep.subr.mxu0 0.0
    %87 = vmatpush1.xpose.msra.mxu0 0.0
    %88 = vmatprep.subr.mxu0 0.0
    %89 = vmatpush1.xpose.msra.mxu0 0.0
    %90 = vmatprep.subr.mxu0 0.0
    %91 = vmatpush1.xpose.msra.mxu0 0.0
    %92 = vmatprep.subr.mxu0 0.0
    %93 = vmatpush1.xpose.msra.mxu0 0.0
    %94 = vmatprep.subr.mxu0 0.0
    %95 = vmatpush1.xpose.msra.mxu0 0.0
    %96 = vmatprep.subr.mxu0 0.0
    %97 = vmatpush1.xpose.msra.mxu0 0.0
    %98 = vmatprep.subr.mxu0 0.0
    %99 = vmatpush1.xpose.msra.mxu0 0.0
    %100 = vmatprep.subr.mxu0 0.0
    %101 = vmatpush1.xpose.msra.mxu0 0.0
    %102 = vmatprep.subr.mxu0 0.0
    %103 = vmatpush1.xpose.msra.mxu0 0.0
    %104 = vmatprep.subr.mxu0 0.0
    %105 = vmatpush1.xpose.msra.mxu0 0.0
    %106 = vmatprep.mubr.f32.mxu0 0.0
    %107 = vmatmul.mubr.f32.gmra.mrb[0].mxu0 %v37
    %v108 = vpop.f32.mrb[0].mxu0
    %v109 = vadd.f32 %v33, %v108
    %v110 = vpop.f32.mrb[0].mxu0
    %111 = vdwg.mxu0
    %vm112 = vcmask 64512
    %v113 = vsel %vm112, %v109, -inf
    %v114 = vrot.slane %v113, 4
    %v115 = vmax.f32 %v113, %v114
    %v116 = vrot.slane %v115, 2
    %v117 = vmax.f32 %v115, %v116
    %v118 = vrot.slane %v117, 1
    %v119 = vmax.f32 %v117, %v118
    %v120 = vsub.f32 %v109, %v119
    %v121 = vmul.f32 %v120, 1.442695
    %v122 = vpow.pop %v121
    %v123 = vsel %vm112, %v122, 0.0
    %v124 = vrot.slane %v123, 4
    %v125 = vadd.f32 %v123, %v124
    %v126 = vrot.slane %v125, 2
    %v127 = vadd.f32 %v125, %v126
    %v128 = vrot.slane %v127, 1
    %v129 = vadd.f32 %v127, %v128
    %v130 = vlog2.pop %v129
    %v131 = vmul.f32 %v130, 0.6931472
    %v132 = vsub.f32 %v120, %v131
    %133 = vst.msk [vmem:[#allocation5] sm:$0xff] %vm112, %v132
    // Predicated region
    $region18: #{tpu_custom_call.1} parent=1 // pred_check
      _
    $region19: #{tpu_custom_call.1} parent=1 // pred_check_branch
      %135 = sbr.rel (0) target = $region21
    $region20: #{tpu_custom_call.1} parent=1 // pred_region
      %s137 = ssub.s32 128, 128
      %138 = vsyncadd [#allocation4], %s137
      %s140 = sshll.u32 [#allocation5], 4
      %s141 = int_to_ptr.vmem [resolvable:$true] %s140
      %143 = dma.vmem_to_hbm [thread:$0]  %s141, 128, %s3, [#allocation4]
    $region21: #{tpu_custom_call.1} parent=1 // pred_fallthru
      _
    // Predicated region
    $region22: #{tpu_custom_call.1} parent=1 // pred_check
      _
    $region23: #{tpu_custom_call.1} parent=1 // pred_check_branch
      %145 = sbr.rel (0) target = $region25
    $region24: #{tpu_custom_call.1} parent=1 // pred_region
      %146 = dma.done [#allocation4], 128
    $region25: #{tpu_custom_call.1} parent=1 // pred_fallthru
      _
    %147 = vsyncpa [#allocation3], 1
    %148 = vsyncpa [#allocation4], 1

</llo_original>
